<compile_context>
chip_gen: v7x
topology: tpu7x:2x2x1
jax: 0.10.0
libtpu: 0.0.40
codegen_flags: <defaults>
</compile_context>

<pallas_src>
import math
import functools

import jax
import jax.numpy as jnp
from jax.experimental import pallas as pl
from jax.experimental.pallas import tpu as pltpu


# ----------------------------- Pallas kernel -------------------------------
def _add_pe_kernel(x_ref, pe_ref, o_ref, *, batch: int):
    # x_ref / o_ref : (tl, N*C) lane-dense VMEM tiles.
    # pe_ref        : (tl, C)   tiny pe tile, replicated across the batch inside
    #                 the kernel.  The replication rides VPU/XLU slots that sit
    #                 idle in this HBM-bound kernel (free filler).
    pe = pe_ref[...]
    if batch > 1:
        pe = jnp.tile(pe, (1, batch))
    o_ref[...] = x_ref[...] + pe


# --------------------------- device / tile selection ------------------------
def _tpu_info():
    """Best-effort (vmem_bytes, num_tensorcores); conservative fallbacks."""
    vmem = 64 * 1024 * 1024   # v7x-conservative default
    cores = 1                 # single TC (v5e/v6e) unless proven otherwise
    try:
        info = pltpu.get_tpu_info()
        for attr in ("vmem_capacity_bytes", "vmem_size_bytes", "vmem_bytes"):
            v = getattr(info, attr, None)
            if v:
                vmem = int(v)
                break
        for attr in ("num_cores", "num_tensorcores", "tensorcore_count",
                     "core_count", "cores_per_chip"):
            v = getattr(info, attr, None)
            if v:
                cores = int(v)
                break
    except Exception:
        pass
    return vmem, cores


def _pick_block_rows(L, N, C, itemsize):
    """Row-block over the [L, N*C] view.

    (a) double-buffered (x + out + pe) working set fits in a modest budget that
        stays under every generation's default scoped-VMEM limit,
    (b) rounded to the dtype's sublane packing (8 f32 / 16 bf16 / 32 int8),
    (c) only split a single full-extent block when the chip has >= 2 TensorCores
        (v7x) and the problem is big enough to amortize per-step overhead.
    """
    vmem, cores = _tpu_info()
    budget = min(vmem // 8, 8 * 1024 * 1024)
    per_row_bytes = 2 * (2 * N * C + C) * itemsize   # x + out + pe, double-buffered
    rows = max(1, budget // per_row_bytes)

    row_mult = max(8, 32 // max(1, itemsize))        # sublane packing multiple
    total_bytes = L * N * C * itemsize

    if rows >= L:
        rows = L
        if cores >= 2 and total_bytes > (4 * 1024 * 1024) and L >= 2 * row_mult:
            # shard the grid across v7x's two TensorCores
            rows = max(row_mult, (pl.cdiv(L, 2) // row_mult) * row_mult)
    else:
        rows = max(row_mult, (rows // row_mult) * row_mult)
    return int(min(rows, L))


# ------------------------------- forward ------------------------------------
@functools.partial(jax.jit, static_argnames=("min_pallas_bytes",))
def positional_encoding_forward(x, pe, *, min_pallas_bytes: int = 64 * 1024):
    """x: [L, N, C], pe: [max_len, 1, C] -> x + pe[:L], shape [L, N, C]."""
    L, N, C = x.shape
    itemsize = jnp.dtype(x.dtype).itemsize
    pe_l = pe[:L].reshape(L, C).astype(x.dtype)      # tiny [L, C] addend

    # Fast path: at tiny sizes pallas_call launch/grid overhead dominates.
    if L * N * C * itemsize < min_pallas_bytes:
        return x + pe_l[:, None, :]

    # Lane-dense 2-D view (free row-major reshape): last dim N*C on lanes.
    x2 = x.reshape(L, N * C)

    block_rows = _pick_block_rows(L, N, C, itemsize)
    grid = (pl.cdiv(L, block_rows),)

    out2 = pl.pallas_call(
        functools.partial(_add_pe_kernel, batch=N),
        out_shape=jax.ShapeDtypeStruct((L, N * C), x.dtype),
        grid_spec=pltpu.PrefetchScalarGridSpec(
            num_scalar_prefetch=0,
            grid=grid,
            in_specs=[
                pl.BlockSpec((block_rows, N * C), lambda i: (i, 0)),
                pl.BlockSpec((block_rows, C), lambda i: (i, 0)),
            ],
            out_specs=pl.BlockSpec((block_rows, N * C), lambda i: (i, 0)),
        ),
        compiler_params=pltpu.CompilerParams(
            dimension_semantics=("parallel",),
        ),
    )(x2, pe_l)

    return out2.reshape(L, N, C)


# ----------------------- parameter / buffer construction --------------------
def make_pe(pe_type: str, d_model: int, max_len: int = 5000, key=None):
    if pe_type == "fully_learnable":
        # nn.Parameter(torch.randn(max_len, 1, d_model)) -- deterministic init here
        if key is None:
            key = jax.random.PRNGKey(42)
        return jax.random.normal(key, (max_len, 1, d_model), dtype=jnp.float32)
    elif pe_type == "sinusoidal":
        position = jnp.arange(0, max_len, dtype=jnp.float32)[:, None]          # [max_len, 1]
        div_term = jnp.exp(jnp.arange(0, d_model, 2, dtype=jnp.float32)
                           * (-math.log(10000.0) / d_model))                   # [d_model/2]
        pe = jnp.zeros((max_len, d_model), dtype=jnp.float32)
        pe = pe.at[:, 0::2].set(jnp.sin(position * div_term))
        pe = pe.at[:, 1::2].set(jnp.cos(position * div_term))
        return pe[:, None, :]                                                  # [max_len, 1, d_model]
    else:
        raise RuntimeError(
            "PE type should be fully_learnable/sinusoidal, not {}".format(pe_type)
        )


# --------------------------------- main -------------------------------------
if __name__ == "__main__":
    key = jax.random.PRNGKey(0)
    kx1, kx2, kp = jax.random.split(key, 3)

    # --- Pallas path: encoder-style shapes (image_size=14 -> L=196 tokens) ----
    L1, N1, C1 = 14 * 14, 2, 128
    x_enc = jax.random.normal(kx1, (L1, N1, C1), dtype=jnp.float32)
    pe_learn = make_pe("fully_learnable", d_model=C1, max_len=L1, key=kp)
    out_enc = positional_encoding_forward(x_enc, pe_learn)
    jax.block_until_ready(out_enc)
    ref_enc = x_enc + pe_learn[:L1]
    assert out_enc.shape == (L1, N1, C1)
    assert jnp.allclose(out_enc, ref_enc, atol=1e-6), "learnable/encoder mismatch"

    # --- fast path: decoder-style tiny shapes (seq=8, batch=2, hidden=32) -----
    L2, N2, C2 = 8, 2, 32
    x_dec = jax.random.normal(kx2, (L2, N2, C2), dtype=jnp.float32)
    pe_sin = make_pe("sinusoidal", d_model=C2, max_len=20)
    out_dec = positional_encoding_forward(x_dec, pe_sin)
    jax.block_until_ready(out_dec)
    ref_dec = x_dec + pe_sin[:L2]
    assert jnp.allclose(out_dec, ref_dec, atol=1e-6), "sinusoidal/decoder mismatch"

    print("KERNEL_OK")
</pallas_src>

<mosaic_0001>
module attributes {stable_mosaic.version = 11 : i64} {
  func.func @_add_pe_kernel(%arg0: i32, %arg1: memref<196x256xf32, #tpu.memory_space<vmem>>, %arg2: memref<196x128xf32, #tpu.memory_space<vmem>>, %arg3: memref<196x256xf32, #tpu.memory_space<vmem>>) attributes {dimension_semantics = [#tpu.dimension_semantics<parallel>], iteration_bounds = array<i64: 1>, scalar_prefetch = 0 : i64, scratch_operands = 0 : i64, tpu.core_type = #tpu.core_type<tc>, window_params = [{transform_indices = @transform_0, window_bounds = array<i64: 196, 256>}, {transform_indices = @transform_1, window_bounds = array<i64: 196, 128>}, {transform_indices = @transform_2, window_bounds = array<i64: 196, 256>}]} {
    %c0 = arith.constant 0 : index
    %c0_0 = arith.constant 0 : index
    %0 = vector.load %arg2[%c0, %c0_0] : memref<196x128xf32, #tpu.memory_space<vmem>>, vector<196x128xf32>
    %1 = tpu.concatenate %0, %0 in 1 : vector<196x128xf32>, vector<196x128xf32> -> vector<196x256xf32>
    %c0_1 = arith.constant 0 : index
    %c0_2 = arith.constant 0 : index
    %2 = vector.load %arg1[%c0_1, %c0_2] : memref<196x256xf32, #tpu.memory_space<vmem>>, vector<196x256xf32>
    %3 = arith.addf %2, %1 : vector<196x256xf32>
    %c0_3 = arith.constant 0 : index
    %c0_4 = arith.constant 0 : index
    %4 = vector.load %arg3[%c0_3, %c0_4] : memref<196x256xf32, #tpu.memory_space<vmem>>, vector<196x256xf32>
    tpu.vector_store %arg3[%c0_3, %c0_4], %3 {strides = array<i32>} : memref<196x256xf32, #tpu.memory_space<vmem>>, vector<196x256xf32>,
    return
  }
  func.func @transform_0(%arg0: i32) -> (i32, i32) {
    %c0_i32 = arith.constant 0 : i32
    %c0_i32_0 = arith.constant 0 : i32
    return %arg0, %c0_i32 : i32, i32
  }
  func.func @transform_1(%arg0: i32) -> (i32, i32) {
    %c0_i32 = arith.constant 0 : i32
    %c0_i32_0 = arith.constant 0 : i32
    return %arg0, %c0_i32 : i32, i32
  }
  func.func @transform_2(%arg0: i32) -> (i32, i32) {
    %c0_i32 = arith.constant 0 : i32
    %c0_i32_0 = arith.constant 0 : i32
    return %arg0, %c0_i32 : i32, i32
  }
}

</mosaic_0001>

<llo_original>
// kernel: positional_encoding_forward.1
$region0: #{positional_encoding_forward.1}
  #allocation0 [shape = 'u32[]', space=smem, size = 0x4, offset = 0x4, fixed_abs, tag = 'smem constant byte address 0x4 - core index']
  #allocation1 [shape = 'u32[144,128]{1,0:T(1,128)}', space=vmem, size = 0x12000, scoped, tag = 'internal scratch']
  %s0 = inlined_call_operand.vmem [shape: f32[196,256], index: 0, kind: input, shape index: {}]
  %s1 = inlined_call_operand.vmem [shape: f32[196,128], index: 1, kind: input, shape index: {}]
  %s2 = inlined_call_operand.vmem [shape: f32[196,256], index: 2, kind: output, shape index: {}]
  %s3 = sld [smem:[#allocation0]]
  $region18: #{positional_encoding_forward.1} parent=0
    _
  %s5 = ssub.s32 1, %s3
  %s6 = scalar_select 0, %s5, %s3
  // Predicated region
  $region2: #{positional_encoding_forward.1} parent=0 // pred_check
    _
  $region3: #{positional_encoding_forward.1} parent=0 // pred_check_branch
    %8 = sbr.rel (0) target = $region5
  $region4: #{positional_encoding_forward.1} parent=0 // pred_region
    _
  $region5: #{positional_encoding_forward.1} parent=0 // pred_fallthru
    _
  // Predicated region
  $region6: #{positional_encoding_forward.1} parent=0 // pred_check
    _
  $region7: #{positional_encoding_forward.1} parent=0 // pred_check_branch
    %10 = sbr.rel (0) target = $region9
  $region8: #{positional_encoding_forward.1} parent=0 // pred_region
    _
  $region9: #{positional_encoding_forward.1} parent=0 // pred_fallthru
    _
  %v11 = vld [vmem:[%s1] sm:$0xff]
  %v12 = vld [vmem:[%s1 + $0x8] sm:$0xff]
  %v13 = vld [vmem:[%s1 + $0x10] sm:$0xff]
  %v14 = vld [vmem:[%s1 + $0x18] sm:$0xff]
  %v15 = vld [vmem:[%s1 + $0x20] sm:$0xff]
  %v16 = vld [vmem:[%s1 + $0x28] sm:$0xff]
  %v17 = vld [vmem:[%s1 + $0x30] sm:$0xff]
  %v18 = vld [vmem:[%s1 + $0x38] sm:$0xff]
  %v19 = vld [vmem:[%s1 + $0x40] sm:$0xff]
  %v20 = vld [vmem:[%s1 + $0x48] sm:$0xff]
  %v21 = vld [vmem:[%s1 + $0x50] sm:$0xff]
  %v22 = vld [vmem:[%s1 + $0x58] sm:$0xff]
  %v23 = vld [vmem:[%s1 + $0x60] sm:$0xff]
  %v24 = vld [vmem:[%s1 + $0x68] sm:$0xff]
  %v25 = vld [vmem:[%s1 + $0x70] sm:$0xff]
  %v26 = vld [vmem:[%s1 + $0x78] sm:$0xff]
  %v27 = vld [vmem:[%s1 + $0x80] sm:$0xff]
  %v28 = vld [vmem:[%s1 + $0x88] sm:$0xff]
  %v29 = vld [vmem:[%s1 + $0x90] sm:$0xff]
  %v30 = vld [vmem:[%s1 + $0x98] sm:$0xff]
  %v31 = vld [vmem:[%s1 + $0xa0] sm:$0xff]
  %v32 = vld [vmem:[%s1 + $0xa8] sm:$0xff]
  %v33 = vld [vmem:[%s1 + $0xb0] sm:$0xff]
  %v34 = vld [vmem:[%s1 + $0xb8] sm:$0xff]
  %v35 = vld [vmem:[%s1 + $0xc0] sm:$0xf]
  %v36 = vld [vmem:[%s0] sm:$0xff]
  %v37 = vld [vmem:[%s0 + $0x8] sm:$0xff]
  %v38 = vld [vmem:[%s0 + $0x10] sm:$0xff]
  %v39 = vld [vmem:[%s0 + $0x18] sm:$0xff]
  %v40 = vld [vmem:[%s0 + $0x20] sm:$0xff]
  %v41 = vld [vmem:[%s0 + $0x28] sm:$0xff]
  %v42 = vld [vmem:[%s0 + $0x30] sm:$0xff]
  %v43 = vld [vmem:[%s0 + $0x38] sm:$0xff]
  %v44 = vld [vmem:[%s0 + $0x40] sm:$0xff]
  %v45 = vld [vmem:[%s0 + $0x48] sm:$0xff]
  %v46 = vld [vmem:[%s0 + $0x50] sm:$0xff]
  %v47 = vld [vmem:[%s0 + $0x58] sm:$0xff]
  %v48 = vld [vmem:[%s0 + $0x60] sm:$0xff]
  %v49 = vld [vmem:[%s0 + $0x68] sm:$0xff]
  %v50 = vld [vmem:[%s0 + $0x70] sm:$0xff]
  %v51 = vld [vmem:[%s0 + $0x78] sm:$0xff]
  %v52 = vld [vmem:[%s0 + $0x80] sm:$0xff]
  %v53 = vld [vmem:[%s0 + $0x88] sm:$0xff]
  %v54 = vld [vmem:[%s0 + $0x90] sm:$0xff]
  %v55 = vld [vmem:[%s0 + $0x98] sm:$0xff]
  %v56 = vld [vmem:[%s0 + $0xa0] sm:$0xff]
  %v57 = vld [vmem:[%s0 + $0xa8] sm:$0xff]
  %v58 = vld [vmem:[%s0 + $0xb0] sm:$0xff]
  %v59 = vld [vmem:[%s0 + $0xb8] sm:$0xff]
  %v60 = vld [vmem:[%s0 + $0xc0] sm:$0xff]
  %v61 = vld [vmem:[%s0 + $0xc8] sm:$0xff]
  %v62 = vld [vmem:[%s0 + $0xd0] sm:$0xff]
  %v63 = vld [vmem:[%s0 + $0xd8] sm:$0xff]
  %v64 = vld [vmem:[%s0 + $0xe0] sm:$0xff]
  %v65 = vld [vmem:[%s0 + $0xe8] sm:$0xff]
  %v66 = vld [vmem:[%s0 + $0xf0] sm:$0xff]
  %v67 = vld [vmem:[%s0 + $0xf8] sm:$0xff]
  %v68 = vld [vmem:[%s0 + $0x100] sm:$0xff]
  %v69 = vld [vmem:[%s0 + $0x108] sm:$0xff]
  %v70 = vld [vmem:[%s0 + $0x110] sm:$0xff]
  %v71 = vld [vmem:[%s0 + $0x118] sm:$0xff]
  %v72 = vld [vmem:[%s0 + $0x120] sm:$0xff]
  %v73 = vld [vmem:[%s0 + $0x128] sm:$0xff]
  %v74 = vld [vmem:[%s0 + $0x130] sm:$0xff]
  %v75 = vld [vmem:[%s0 + $0x138] sm:$0xff]
  %v76 = vld [vmem:[%s0 + $0x140] sm:$0xff]
  %v77 = vld [vmem:[%s0 + $0x148] sm:$0xff]
  %v78 = vld [vmem:[%s0 + $0x150] sm:$0xff]
  %v79 = vld [vmem:[%s0 + $0x158] sm:$0xff]
  %v80 = vld [vmem:[%s0 + $0x160] sm:$0xff]
  %v81 = vld [vmem:[%s0 + $0x168] sm:$0xff]
  %v82 = vld [vmem:[%s0 + $0x170] sm:$0xff]
  %v83 = vld [vmem:[%s0 + $0x178] sm:$0xff]
  %v84 = vld [vmem:[%s0 + $0x180] sm:$0xf]
  %v85 = vld [vmem:[%s0 + $0x188] sm:$0xf]
  %v86 = vadd.f32 %v36, %v11
  %v87 = vadd.f32 %v37, %v11
  %v88 = vadd.f32 %v38, %v12
  %v89 = vadd.f32 %v39, %v12
  %v90 = vadd.f32 %v40, %v13
  %v91 = vadd.f32 %v41, %v13
  %v92 = vadd.f32 %v42, %v14
  %v93 = vadd.f32 %v43, %v14
  %v94 = vadd.f32 %v44, %v15
  %v95 = vadd.f32 %v45, %v15
  %v96 = vadd.f32 %v46, %v16
  %v97 = vadd.f32 %v47, %v16
  %v98 = vadd.f32 %v48, %v17
  %v99 = vadd.f32 %v49, %v17
  %v100 = vadd.f32 %v50, %v18
  %v101 = vadd.f32 %v51, %v18
  %v102 = vadd.f32 %v52, %v19
  %v103 = vadd.f32 %v53, %v19
  %v104 = vadd.f32 %v54, %v20
  %v105 = vadd.f32 %v55, %v20
  %v106 = vadd.f32 %v56, %v21
  %v107 = vadd.f32 %v57, %v21
  %v108 = vadd.f32 %v58, %v22
  %v109 = vadd.f32 %v59, %v22
  %v110 = vadd.f32 %v60, %v23
  %v111 = vadd.f32 %v61, %v23
  %v112 = vadd.f32 %v62, %v24
  %v113 = vadd.f32 %v63, %v24
  %v114 = vadd.f32 %v64, %v25
  %v115 = vadd.f32 %v65, %v25
  %v116 = vadd.f32 %v66, %v26
  %v117 = vadd.f32 %v67, %v26
  %v118 = vadd.f32 %v68, %v27
  %v119 = vadd.f32 %v69, %v27
  %v120 = vadd.f32 %v70, %v28
  %v121 = vadd.f32 %v71, %v28
  %v122 = vadd.f32 %v72, %v29
  %v123 = vadd.f32 %v73, %v29
  %v124 = vadd.f32 %v74, %v30
  %v125 = vadd.f32 %v75, %v30
  %v126 = vadd.f32 %v76, %v31
  %v127 = vadd.f32 %v77, %v31
  %v128 = vadd.f32 %v78, %v32
  %v129 = vadd.f32 %v79, %v32
  %v130 = vadd.f32 %v80, %v33
  %v131 = vadd.f32 %v81, %v33
  %v132 = vadd.f32 %v82, %v34
  %v133 = vadd.f32 %v83, %v34
  %v134 = vadd.f32 %v84, %v35
  %v135 = vadd.f32 %v85, %v35
  %136 = vst [vmem:[%s2] sm:$0xff] %v86
  %137 = vst [vmem:[%s2 + $0x8] sm:$0xff] %v87
  %138 = vst [vmem:[%s2 + $0x10] sm:$0xff] %v88
  %139 = vst [vmem:[%s2 + $0x18] sm:$0xff] %v89
  %140 = vst [vmem:[%s2 + $0x20] sm:$0xff] %v90
  %141 = vst [vmem:[%s2 + $0x28] sm:$0xff] %v91
  %142 = vst [vmem:[%s2 + $0x30] sm:$0xff] %v92
  %143 = vst [vmem:[%s2 + $0x38] sm:$0xff] %v93
  %144 = vst [vmem:[%s2 + $0x40] sm:$0xff] %v94
  %145 = vst [vmem:[%s2 + $0x48] sm:$0xff] %v95
  %146 = vst [vmem:[%s2 + $0x50] sm:$0xff] %v96
  %147 = vst [vmem:[%s2 + $0x58] sm:$0xff] %v97
  %148 = vst [vmem:[%s2 + $0x60] sm:$0xff] %v98
  %149 = vst [vmem:[%s2 + $0x68] sm:$0xff] %v99
  %150 = vst [vmem:[%s2 + $0x70] sm:$0xff] %v100
  %151 = vst [vmem:[%s2 + $0x78] sm:$0xff] %v101
  %152 = vst [vmem:[%s2 + $0x80] sm:$0xff] %v102
  %153 = vst [vmem:[%s2 + $0x88] sm:$0xff] %v103
  %154 = vst [vmem:[%s2 + $0x90] sm:$0xff] %v104
  %155 = vst [vmem:[%s2 + $0x98] sm:$0xff] %v105
  %156 = vst [vmem:[%s2 + $0xa0] sm:$0xff] %v106
  %157 = vst [vmem:[%s2 + $0xa8] sm:$0xff] %v107
  %158 = vst [vmem:[%s2 + $0xb0] sm:$0xff] %v108
  %159 = vst [vmem:[%s2 + $0xb8] sm:$0xff] %v109
  %160 = vst [vmem:[%s2 + $0xc0] sm:$0xff] %v110
  %161 = vst [vmem:[%s2 + $0xc8] sm:$0xff] %v111
  %162 = vst [vmem:[%s2 + $0xd0] sm:$0xff] %v112
  %163 = vst [vmem:[%s2 + $0xd8] sm:$0xff] %v113
  %164 = vst [vmem:[%s2 + $0xe0] sm:$0xff] %v114
  %165 = vst [vmem:[%s2 + $0xe8] sm:$0xff] %v115
  %166 = vst [vmem:[%s2 + $0xf0] sm:$0xff] %v116
  %167 = vst [vmem:[%s2 + $0xf8] sm:$0xff] %v117
  %168 = vst [vmem:[%s2 + $0x100] sm:$0xff] %v118
  %169 = vst [vmem:[%s2 + $0x108] sm:$0xff] %v119
  %170 = vst [vmem:[%s2 + $0x110] sm:$0xff] %v120
  %171 = vst [vmem:[%s2 + $0x118] sm:$0xff] %v121
  %172 = vst [vmem:[%s2 + $0x120] sm:$0xff] %v122
  %173 = vst [vmem:[%s2 + $0x128] sm:$0xff] %v123
  %174 = vst [vmem:[%s2 + $0x130] sm:$0xff] %v124
  %175 = vst [vmem:[%s2 + $0x138] sm:$0xff] %v125
  %176 = vst [vmem:[%s2 + $0x140] sm:$0xff] %v126
  %177 = vst [vmem:[%s2 + $0x148] sm:$0xff] %v127
  %178 = vst [vmem:[%s2 + $0x150] sm:$0xff] %v128
  %179 = vst [vmem:[%s2 + $0x158] sm:$0xff] %v129
  %180 = vst [vmem:[%s2 + $0x160] sm:$0xff] %v130
  %181 = vst [vmem:[%s2 + $0x168] sm:$0xff] %v131
  %182 = vst [vmem:[%s2 + $0x170] sm:$0xff] %v132
  %183 = vst [vmem:[%s2 + $0x178] sm:$0xff] %v133
  %184 = vst [vmem:[%s2 + $0x180] sm:$0xf] %v134
  %185 = vst [vmem:[%s2 + $0x188] sm:$0xf] %v135
  // Predicated region
  $region10: #{positional_encoding_forward.1} parent=0 // pred_check
    _
  $region11: #{positional_encoding_forward.1} parent=0 // pred_check_branch
    %187 = sbr.rel (0) target = $region13
  $region12: #{positional_encoding_forward.1} parent=0 // pred_region
    _
  $region13: #{positional_encoding_forward.1} parent=0 // pred_fallthru
    _
  // Predicated region
  $region14: #{positional_encoding_forward.1} parent=0 // pred_check
    _
  $region15: #{positional_encoding_forward.1} parent=0 // pred_check_branch
    %189 = sbr.rel (0) target = $region17
  $region16: #{positional_encoding_forward.1} parent=0 // pred_region
    _
  $region17: #{positional_encoding_forward.1} parent=0 // pred_fallthru
    _

</llo_original>
